<compile_context>
chip_gen: v6e
topology: v6e:2x2x1
jax: 0.10.0
libtpu: 0.0.40
codegen_flags: <defaults>
</compile_context>

<pallas_src>
import functools

import jax
import jax.numpy as jnp
from jax.experimental import pallas as pl
from jax.experimental.pallas import tpu as pltpu

H1 = 200
H2 = 200
LANE = 128
SUBLANE = 8


def _round_up(x, m):
    return (x + m - 1) // m * m


def _critic_kernel(state_ref, action_ref, w1_ref, w2x_ref, aux_ref, out_ref):
    f32 = jnp.float32
    a_pad = action_ref.shape[1]
    h1p = w1_ref.shape[1]
    h2p = w2x_ref.shape[1]

    # Single packed aux tile (one DMA): rows [0, a_pad) = w2a, then b1/b2/w3/b3.
    w2a = aux_ref[0:a_pad, :h2p]                        # (A_pad, H2P) f32
    b1 = aux_ref[a_pad + 0:a_pad + 1, :h1p]             # (1, H1P)
    b2 = aux_ref[a_pad + 1:a_pad + 2, :h2p]             # (1, H2P)
    w3 = aux_ref[a_pad + 2:a_pad + 3, :h2p]             # (1, H2P)
    b3 = aux_ref[a_pad + 3:a_pad + 4, 0:1]              # (1, 1)

    # ---- linear1 + ReLU: bf16 MXU pass, f32 accumulate / bias / ReLU. ----
    s = state_ref[...].astype(jnp.bfloat16)             # (TB, state_dim)
    h = jnp.dot(s, w1_ref[...], preferred_element_type=f32) + b1
    h = jnp.maximum(h, 0.0)                              # (TB, H1P) f32

    # ---- linear2 on cat([h, action]) + ReLU. ----
    # Hidden block: aligned (TB,H1P)x(H1P,H2P) bf16 MXU pass.
    # Action block: tiny zero-padded K=A_pad MXU pass, added once (keeps the
    # per-k lane-extract/broadcast chain off the XLU critical path).
    h2 = jnp.dot(h.astype(jnp.bfloat16), w2x_ref[...],
                 preferred_element_type=f32)
    h2 = h2 + jnp.dot(action_ref[...], w2a, preferred_element_type=f32) + b2
    h2 = jnp.maximum(h2, 0.0)                            # (TB, H2P) f32

    # ---- linear3 (out_features = 1): VPU multiply + XLU lane reduction. ----
    out_ref[...] = jnp.sum(h2 * w3, axis=-1, keepdims=True) + b3


def prepare_critic_params(params):
    """One-time weight prep (NOT on the per-call path):
      * transpose PyTorch (out, in) weights to (in, out),
      * zero-pad hidden dims 200 -> 256 (lane-dense, full MXU tiles),
      * store the two big MXU operands (w1, w2x) as bfloat16,
      * split the concat weight W2 into hidden / action row blocks,
      * pack all small tensors (w2a, b1, b2, w3, b3) into ONE f32 tile.
    Padded rows/cols/biases are zero and ReLU(0)=0, so the math is unchanged.
    """
    w1, b1 = params["w1"], params["b1"]
    w2, b2 = params["w2"], params["b2"]
    w3, b3 = params["w3"], params["b3"]

    h1, state_dim = w1.shape                 # PyTorch layout: (out, in)
    h2 = w2.shape[0]
    action_dim = w2.shape[1] - h1
    h1p = _round_up(h1, LANE)                # 200 -> 256
    h2p = _round_up(h2, LANE)                # 200 -> 256
    hp = max(h1p, h2p)
    a_pad = _round_up(action_dim, SUBLANE)   # 4 -> 8
    f32, bf16 = jnp.float32, jnp.bfloat16

    # linear1 weight: (state_dim, h1p) bf16, padded cols zero.
    w1_p = jnp.zeros((state_dim, h1p), f32).at[:, :h1].set(w1.T.astype(f32))
    w1_p = w1_p.astype(bf16)

    # linear2 weight split into hidden-rows block (bf16) and action-rows block.
    w2_t = w2.T.astype(f32)                  # (h1 + action_dim, h2)
    w2x = jnp.zeros((h1p, h2p), f32).at[:h1, :h2].set(w2_t[:h1, :]).astype(bf16)

    # Packed aux tile: rows [0, a_pad) = w2a, then b1, b2, w3, b3 (all f32).
    n_rows = _round_up(a_pad + 4, SUBLANE)
    aux = jnp.zeros((n_rows, hp), f32)
    aux = aux.at[:action_dim, :h2].set(w2_t[h1:, :])
    aux = aux.at[a_pad + 0, :h1].set(b1.astype(f32))
    aux = aux.at[a_pad + 1, :h2].set(b2.astype(f32))
    aux = aux.at[a_pad + 2, :h2].set(w3.reshape(-1).astype(f32))
    aux = aux.at[a_pad + 3, 0].set(b3.reshape(()).astype(f32))

    return {"w1": w1_p, "w2x": w2x, "aux": aux}


@functools.partial(jax.jit, static_argnames=("block_b",))
def critic_forward(state, action, prepped, block_b=512):
    """state: (B, state_dim), action: (B, action_dim) -> (B, 1) float32.

    `prepped` = prepare_critic_params(params) (built once, reused per call).
    The batch is tiled with a 1-D "parallel" grid: batch rows stream through
    VMEM (software-pipelined DMAs, VMEM bounded regardless of B, shardable
    across TensorCores on multi-TC chips) while the weight tiles stay
    resident via constant index_maps (DMA'd once per call).
    """
    B, state_dim = state.shape
    action_dim = action.shape[1]
    h1p = prepped["w1"].shape[1]
    h2p = prepped["w2x"].shape[1]
    aux_rows, hp = prepped["aux"].shape
    a_pad = _round_up(action_dim, SUBLANE)

    # Batch tile: multiple of 8 sublanes.  512 default fills the 256x256 MXU
    # on v6e/v7x, is a multiple of 128 for v5e, and keeps per-tile VMEM use
    # far below the 16 MiB v5e scoped default / 64 MiB v7x physical.
    tb = min(block_b, _round_up(B, SUBLANE))
    bp = _round_up(B, tb)

    # Zero-pad action lanes (4 -> 8, aligned tiny MXU pass) and the batch to
    # a multiple of the tile; padded rows are sliced off below.
    action_p = jnp.pad(action, ((0, bp - B), (0, a_pad - action_dim)))
    state_p = jnp.pad(state, ((0, bp - B), (0, 0))) if bp != B else state

    # Advisory per-call cost so XLA schedules/overlaps around the custom call.
    flops = 2 * bp * (state_dim * h1p + h1p * h2p + a_pad * h2p + h2p)
    bytes_accessed = (4 * (state_p.size + action_p.size + bp)
                      + 2 * (prepped["w1"].size + prepped["w2x"].size)
                      + 4 * prepped["aux"].size)
    cost = pl.CostEstimate(flops=int(flops), transcendentals=0,
                           bytes_accessed=int(bytes_accessed))

    out = pl.pallas_call(
        _critic_kernel,
        out_shape=jax.ShapeDtypeStruct((bp, 1), jnp.float32),
        grid=(bp // tb,),
        in_specs=[
            pl.BlockSpec((tb, state_dim), lambda i: (i, 0)),
            pl.BlockSpec((tb, a_pad), lambda i: (i, 0)),
            pl.BlockSpec((state_dim, h1p), lambda i: (0, 0)),
            pl.BlockSpec((h1p, h2p), lambda i: (0, 0)),
            pl.BlockSpec((aux_rows, hp), lambda i: (0, 0)),
        ],
        out_specs=pl.BlockSpec((tb, 1), lambda i: (i, 0)),
        compiler_params=pltpu.CompilerParams(
            dimension_semantics=("parallel",)),
        cost_estimate=cost,
    )(state_p, action_p, prepped["w1"], prepped["w2x"], prepped["aux"])
    return out if bp == B else out[:B]


def init_critic_params(key, state_dim, action_dim, h1=H1, h2=H2, init_w=0.003):
    """Deterministic init mirroring nn.Linear defaults (+ init_w for layer 3)."""
    ks = jax.random.split(key, 6)

    def linear_init(kw, kb, fan_in, fan_out):
        bound = 1.0 / jnp.sqrt(fan_in)
        w = jax.random.uniform(kw, (fan_out, fan_in), jnp.float32, -bound, bound)
        b = jax.random.uniform(kb, (fan_out,), jnp.float32, -bound, bound)
        return w, b

    w1, b1 = linear_init(ks[0], ks[1], state_dim, h1)
    w2, b2 = linear_init(ks[2], ks[3], h1 + action_dim, h2)
    w3 = jax.random.uniform(ks[4], (1, h2), jnp.float32, -init_w, init_w)
    b3 = jax.random.uniform(ks[5], (1,), jnp.float32, -init_w, init_w)
    return {"w1": w1, "b1": b1, "w2": w2, "b2": b2, "w3": w3, "b3": b3}


def critic_reference(state, action, params):
    """Pure-JAX reference reproducing the PyTorch forward exactly."""
    x = jnp.maximum(state @ params["w1"].T + params["b1"], 0.0)
    x = jnp.concatenate([x, action], axis=1)
    x = jnp.maximum(x @ params["w2"].T + params["b2"], 0.0)
    return x @ params["w3"].T + params["b3"]


if __name__ == "__main__":
    state_dim, action_dim = 16, 4

    key = jax.random.PRNGKey(0)
    k_state, k_action, k_params, k_state2, k_action2 = jax.random.split(key, 5)

    params = init_critic_params(k_params, state_dim, action_dim)

    # One-time prep (transpose / split / pad / bf16 / pack) — off the call path.
    prepped = prepare_critic_params(params)
    prepped = jax.tree_util.tree_map(jax.block_until_ready, prepped)

    # Small inference-style batch (single tile, grid of 1).
    batch = 8
    state = jax.random.normal(k_state, (batch, state_dim), jnp.float32)
    action = jax.random.normal(k_action, (batch, action_dim), jnp.float32)
    out = jax.block_until_ready(critic_forward(state, action, prepped))
    ref = critic_reference(state, action, params)
    assert out.shape == (batch, 1), out.shape
    # Both the kernel (explicit bf16 MXU operands) and the XLA reference
    # (DEFAULT precision => bf16 MXU passes) run bf16 matmul passes, so they
    # agree to ~1e-3; tolerance set accordingly.
    assert jnp.allclose(out, ref, atol=5e-3, rtol=2e-2), (out, ref)

    # Larger, non-tile-aligned batch exercising the batch grid + padding path.
    batch2 = 260
    state2 = jax.random.normal(k_state2, (batch2, state_dim), jnp.float32)
    action2 = jax.random.normal(k_action2, (batch2, action_dim), jnp.float32)
    out2 = jax.block_until_ready(
        critic_forward(state2, action2, prepped, block_b=128))
    ref2 = critic_reference(state2, action2, params)
    assert out2.shape == (batch2, 1), out2.shape
    assert jnp.allclose(out2, ref2, atol=5e-3, rtol=2e-2), (out2, ref2)

    print("KERNEL_OK")
</pallas_src>

<mosaic_0001>
module attributes {stable_mosaic.version = 11 : i64} {
  func.func @_critic_kernel(%arg0: i32, %arg1: memref<8x16xf32, #tpu.memory_space<vmem>>, %arg2: memref<8x8xf32, #tpu.memory_space<vmem>>, %arg3: memref<16x256xbf16, #tpu.memory_space<vmem>>, %arg4: memref<256x256xbf16, #tpu.memory_space<vmem>>, %arg5: memref<16x256xf32, #tpu.memory_space<vmem>>, %arg6: memref<8x1xf32, #tpu.memory_space<vmem>>) attributes {dimension_semantics = [#tpu.dimension_semantics<parallel>], iteration_bounds = array<i64: 1>, scalar_prefetch = 0 : i64, scratch_operands = 0 : i64, tpu.core_type = #tpu.core_type<tc>, window_params = [{transform_indices = @transform_0, window_bounds = array<i64: 8, 16>}, {transform_indices = @transform_1, window_bounds = array<i64: 8, 8>}, {pipeline_mode = #tpu.pipeline_mode<synchronous>, transform_indices = @transform_2, window_bounds = array<i64: 16, 256>}, {pipeline_mode = #tpu.pipeline_mode<synchronous>, transform_indices = @transform_3, window_bounds = array<i64: 256, 256>}, {pipeline_mode = #tpu.pipeline_mode<synchronous>, transform_indices = @transform_4, window_bounds = array<i64: 16, 256>}, {transform_indices = @transform_5, window_bounds = array<i64: 8, 1>}]} {
    %c0 = arith.constant 0 : index
    %c0_0 = arith.constant 0 : index
    %0 = vector.load %arg5[%c0, %c0_0] : memref<16x256xf32, #tpu.memory_space<vmem>>, vector<8x256xf32>
    %c8 = arith.constant 8 : index
    %c0_1 = arith.constant 0 : index
    %1 = vector.load %arg5[%c8, %c0_1] : memref<16x256xf32, #tpu.memory_space<vmem>>, vector<1x256xf32>
    %c9 = arith.constant 9 : index
    %c0_2 = arith.constant 0 : index
    %2 = vector.load %arg5[%c9, %c0_2] : memref<16x256xf32, #tpu.memory_space<vmem>>, vector<1x256xf32>
    %c10 = arith.constant 10 : index
    %c0_3 = arith.constant 0 : index
    %3 = vector.load %arg5[%c10, %c0_3] : memref<16x256xf32, #tpu.memory_space<vmem>>, vector<1x256xf32>
    %c11 = arith.constant 11 : index
    %c0_4 = arith.constant 0 : index
    %4 = vector.load %arg5[%c11, %c0_4] : memref<16x256xf32, #tpu.memory_space<vmem>>, vector<1x1xf32>
    %c0_5 = arith.constant 0 : index
    %c0_6 = arith.constant 0 : index
    %5 = vector.load %arg1[%c0_5, %c0_6] : memref<8x16xf32, #tpu.memory_space<vmem>>, vector<8x16xf32>
    %6 = arith.truncf %5 : vector<8x16xf32> to vector<8x16xbf16>
    %c0_7 = arith.constant 0 : index
    %c0_8 = arith.constant 0 : index
    %7 = vector.load %arg3[%c0_7, %c0_8] : memref<16x256xbf16, #tpu.memory_space<vmem>>, vector<16x256xbf16>
    %cst = arith.constant dense<0.000000e+00> : vector<8x256xf32>
    %8 = tpu.matmul %6, %7, %cst {dimension_numbers = #tpu.dot_dimension_numbers<[1], [0], [0], [1], [0, 0, 1, 1], [], []>} : vector<8x16xbf16>, vector<16x256xbf16>, vector<8x256xf32> -> vector<8x256xf32>
    %9 = vector.broadcast %1 : vector<1x256xf32> to vector<8x256xf32>
    %10 = arith.addf %8, %9 : vector<8x256xf32>
    %cst_9 = arith.constant 0.000000e+00 : f32
    %11 = vector.broadcast %cst_9 : f32 to vector<8x256xf32>
    %12 = arith.maximumf %10, %11 : vector<8x256xf32>
    %13 = arith.truncf %12 : vector<8x256xf32> to vector<8x256xbf16>
    %c0_10 = arith.constant 0 : index
    %c0_11 = arith.constant 0 : index
    %14 = vector.load %arg4[%c0_10, %c0_11] : memref<256x256xbf16, #tpu.memory_space<vmem>>, vector<256x256xbf16>
    %cst_12 = arith.constant dense<0.000000e+00> : vector<8x256xf32>
    %15 = tpu.matmul %13, %14, %cst_12 {dimension_numbers = #tpu.dot_dimension_numbers<[1], [0], [0], [1], [0, 0, 1, 1], [], []>} : vector<8x256xbf16>, vector<256x256xbf16>, vector<8x256xf32> -> vector<8x256xf32>
    %c0_13 = arith.constant 0 : index
    %c0_14 = arith.constant 0 : index
    %16 = vector.load %arg2[%c0_13, %c0_14] : memref<8x8xf32, #tpu.memory_space<vmem>>, vector<8x8xf32>
    %cst_15 = arith.constant dense<0.000000e+00> : vector<8x256xf32>
    %17 = tpu.matmul %16, %0, %cst_15 {dimension_numbers = #tpu.dot_dimension_numbers<[1], [0], [0], [1], [0, 0, 1, 1], [], []>} : vector<8x8xf32>, vector<8x256xf32>, vector<8x256xf32> -> vector<8x256xf32>
    %18 = arith.addf %15, %17 : vector<8x256xf32>
    %19 = vector.broadcast %2 : vector<1x256xf32> to vector<8x256xf32>
    %20 = arith.addf %18, %19 : vector<8x256xf32>
    %cst_16 = arith.constant 0.000000e+00 : f32
    %21 = vector.broadcast %cst_16 : f32 to vector<8x256xf32>
    %22 = arith.maximumf %20, %21 : vector<8x256xf32>
    %23 = vector.broadcast %3 : vector<1x256xf32> to vector<8x256xf32>
    %24 = arith.mulf %22, %23 : vector<8x256xf32>
    %cst_17 = arith.constant dense<0.000000e+00> : vector<8xf32>
    %25 = vector.multi_reduction <add>, %24, %cst_17 [1] : vector<8x256xf32> to vector<8xf32>
    %26 = vector.shape_cast %25 : vector<8xf32> to vector<8x1xf32>
    %27 = vector.broadcast %4 : vector<1x1xf32> to vector<8x1xf32>
    %28 = arith.addf %26, %27 : vector<8x1xf32>
    %c0_18 = arith.constant 0 : index
    %c0_19 = arith.constant 0 : index
    %29 = vector.load %arg6[%c0_18, %c0_19] : memref<8x1xf32, #tpu.memory_space<vmem>>, vector<8x1xf32>
    tpu.vector_store %arg6[%c0_18, %c0_19], %28 {strides = array<i32>} : memref<8x1xf32, #tpu.memory_space<vmem>>, vector<8x1xf32>,
    return
  }
  func.func @transform_0(%arg0: i32) -> (i32, i32) {
    %c0_i32 = arith.constant 0 : i32
    %c0_i32_0 = arith.constant 0 : i32
    return %arg0, %c0_i32 : i32, i32
  }
  func.func @transform_1(%arg0: i32) -> (i32, i32) {
    %c0_i32 = arith.constant 0 : i32
    %c0_i32_0 = arith.constant 0 : i32
    return %arg0, %c0_i32 : i32, i32
  }
  func.func @transform_2(%arg0: i32) -> (i32, i32) {
    %c0_i32 = arith.constant 0 : i32
    %c0_i32_0 = arith.constant 0 : i32
    %c0_i32_1 = arith.constant 0 : i32
    return %c0_i32, %c0_i32_0 : i32, i32
  }
  func.func @transform_3(%arg0: i32) -> (i32, i32) {
    %c0_i32 = arith.constant 0 : i32
    %c0_i32_0 = arith.constant 0 : i32
    %c0_i32_1 = arith.constant 0 : i32
    return %c0_i32, %c0_i32_0 : i32, i32
  }
  func.func @transform_4(%arg0: i32) -> (i32, i32) {
    %c0_i32 = arith.constant 0 : i32
    %c0_i32_0 = arith.constant 0 : i32
    %c0_i32_1 = arith.constant 0 : i32
    return %c0_i32, %c0_i32_0 : i32, i32
  }
  func.func @transform_5(%arg0: i32) -> (i32, i32) {
    %c0_i32 = arith.constant 0 : i32
    %c0_i32_0 = arith.constant 0 : i32
    return %arg0, %c0_i32 : i32, i32
  }
}

</mosaic_0001>

<llo_original>
// kernel: critic_forward.1
$region0: #{critic_forward.1}
  #allocation0 [shape = 'u32[]', space=smem, size = 0x4, offset = 0x4, fixed_abs, tag = 'smem constant byte address 0x4 - core index']
  #allocation1 [shape = 'u32[144,128]{1,0:T(1,128)}', space=vmem, size = 0x12000, scoped, tag = 'internal scratch']
  %s0 = inlined_call_operand.hbm [shape: f32[8,16], index: 0, kind: input, shape index: {}]
  %s1 = inlined_call_operand.vmem [shape: f32[8,8], index: 1, kind: input, shape index: {}]
  %s2 = inlined_call_operand.hbm [shape: bf16[16,256], index: 2, kind: input, shape index: {}]
  %s3 = inlined_call_operand.hbm [shape: bf16[256,256], index: 3, kind: input, shape index: {}]
  %s4 = inlined_call_operand.vmem [shape: f32[16,256], index: 4, kind: input, shape index: {}]
  %s5 = inlined_call_operand.vmem [shape: f32[8,1], index: 5, kind: output, shape index: {}]
  %s6 = sld [smem:[#allocation0]]
  $region42: #{critic_forward.1} parent=0
    _
  %s8 = ssub.s32 1, %s6
  %s9 = scalar_select 0, %s8, %s6
  $region1: #{critic_forward.1} parent=0
    #allocation2 [shape = 'u8[4096]{0}', space=vmem, size = 0x1000, scoped, tag = 'input window, operand 0, single buffered']
    #allocation3 [shape = 's32[1]{0}', space=sflag, size = 0x4, scoped, tag = 'scoped memory for critic_forward.1']
    #allocation4 [shape = 'u8[8192]{0}', space=vmem, size = 0x2000, scoped, tag = 'input window, operand 2, single buffered']
    #allocation5 [shape = 's32[1]{0}', space=sflag, size = 0x4, scoped, tag = 'scoped memory for critic_forward.1']
    #allocation6 [shape = 'u8[131072]{0}', space=vmem, size = 0x20000, scoped, tag = 'input window, operand 3, single buffered']
    %10 = vsyncpa [#allocation3], 0
    %11 = vsyncpa [#allocation5], 0
    // Predicated region
    $region2: #{critic_forward.1} parent=1 // pred_check
      _
    $region3: #{critic_forward.1} parent=1 // pred_check_branch
      %13 = sbr.rel (0) target = $region5
    $region4: #{critic_forward.1} parent=1 // pred_region
      %s15 = ssub.s32 128, 128
      %16 = vsyncadd [#allocation3], %s15
      %s18 = sshll.u32 [#allocation2], 4
      %s19 = int_to_ptr.vmem [resolvable:$true] %s18
      %21 = dma.hbm_to_vmem [thread:$0]  %s0, 128, %s19, [#allocation3]
    $region5: #{critic_forward.1} parent=1 // pred_fallthru
      _
    // Predicated region
    $region6: #{critic_forward.1} parent=1 // pred_check
      _
    $region7: #{critic_forward.1} parent=1 // pred_check_branch
      %23 = sbr.rel (0) target = $region9
    $region8: #{critic_forward.1} parent=1 // pred_region
      _
    $region9: #{critic_forward.1} parent=1 // pred_fallthru
      _
    // Predicated region
    $region10: #{critic_forward.1} parent=1 // pred_check
      _
    $region11: #{critic_forward.1} parent=1 // pred_check_branch
      %25 = sbr.rel (0) target = $region13
    $region12: #{critic_forward.1} parent=1 // pred_region
      %s27 = ssub.s32 256, 256
      %28 = vsyncadd [#allocation5], %s27
      %s29 = sshll.u32 [#allocation4], 4
      %s30 = int_to_ptr.vmem [resolvable:$true] %s29
      %35 = dma.hbm_to_vmem [thread:$0]  %s2, 256, %s30, [#allocation5], 128, 128, 8
    $region13: #{critic_forward.1} parent=1 // pred_fallthru
      _
    // Predicated region
    $region14: #{critic_forward.1} parent=1 // pred_check
      _
    $region15: #{critic_forward.1} parent=1 // pred_check_branch
      %37 = sbr.rel (0) target = $region17
    $region16: #{critic_forward.1} parent=1 // pred_region
      %s39 = ssub.s32 4096, 4096
      %40 = vsyncadd [#allocation5], %s39
      %s41 = sshll.u32 [#allocation6], 4
      %s42 = int_to_ptr.vmem [resolvable:$true] %s41
      %47 = dma.hbm_to_vmem [thread:$0]  %s3, 4096, %s42, [#allocation5], 128, 128, 8
    $region17: #{critic_forward.1} parent=1 // pred_fallthru
      _
    // Predicated region
    $region18: #{critic_forward.1} parent=1 // pred_check
      _
    $region19: #{critic_forward.1} parent=1 // pred_check_branch
      %49 = sbr.rel (0) target = $region21
    $region20: #{critic_forward.1} parent=1 // pred_region
      _
    $region21: #{critic_forward.1} parent=1 // pred_fallthru
      _
    // Predicated region
    $region22: #{critic_forward.1} parent=1 // pred_check
      _
    $region23: #{critic_forward.1} parent=1 // pred_check_branch
      %51 = sbr.rel (0) target = $region25
    $region24: #{critic_forward.1} parent=1 // pred_region
      %52 = dma.done [#allocation3], 128
    $region25: #{critic_forward.1} parent=1 // pred_fallthru
      _
    // Predicated region
    $region26: #{critic_forward.1} parent=1 // pred_check
      _
    $region27: #{critic_forward.1} parent=1 // pred_check_branch
      %54 = sbr.rel (0) target = $region29
    $region28: #{critic_forward.1} parent=1 // pred_region
      %55 = dma.done [#allocation5], 256
    $region29: #{critic_forward.1} parent=1 // pred_fallthru
      _
    // Predicated region
    $region30: #{critic_forward.1} parent=1 // pred_check
      _
    $region31: #{critic_forward.1} parent=1 // pred_check_branch
      %57 = sbr.rel (0) target = $region33
    $region32: #{critic_forward.1} parent=1 // pred_region
      %58 = dma.done [#allocation5], 4096
    $region33: #{critic_forward.1} parent=1 // pred_fallthru
      _
    %v60 = vld [vmem:[%s4] sm:$0xff]
    %v61 = vld [vmem:[%s4 + $0x8] sm:$0xff]
    %s62 = scalar_lea.vmem %s4, 16
    %v63 = vld [vmem:[%s62] ss:$8 sm:$0x3]
    %s64 = scalar_lea.vmem %s4, 17
    %v65 = vld [vmem:[%s64] ss:$8 sm:$0x3]
    %s66 = scalar_lea.vmem %s4, 18
    %v67 = vld [vmem:[%s66] ss:$8 sm:$0x3]
    %v68 = vld [vmem:[%s4 + $0x13] ss:$0 sm:$0xff]
    %v69 = vld [vmem:[#allocation2] sm:$0xff]
    %v70 = vpack.c.bf16 %v69, %v69
    %v71 = vld [vmem:[#allocation4] sm:$0xff]
    %v72 = vld [vmem:[#allocation4 + $0x8] sm:$0xff]
    %v74 = vlaneseq
    %v75 = vshrl.u32 %v74, 7
    %v76 = vsub.s32 0, %v75
    %v77 = vrot.slane %v63, %v76
    %v78 = vlaneseq
    %v79 = vshrl.u32 %v78, 7
    %v80 = vsub.s32 1, %v79
    %v81 = vrot.slane %v63, %v80
    %v86 = vunpack.c.l.b16 %v71
    %v87 = vunpack.c.h.b16 %v71
    %v88 = vunpack.c.l.b16 %v72
    %v89 = vunpack.c.h.b16 %v72
    %v90 = vpack.c.b16 %v88, %v86
    %v91 = vpack.c.b16 %v89, %v87
    %vm94 = vcmask 130048
    %v96 = vsel %vm94, %v70, 0
    %98 = vmatprep.subr.bf16.mxu0 0
    %99 = vmatpush1.bf16.msra.mxu0 0
    %100 = vmatprep.subr.bf16.mxu0 0
    %101 = vmatpush1.bf16.msra.mxu0 0
    %102 = vmatprep.subr.bf16.mxu0 0
    %103 = vmatpush1.bf16.msra.mxu0 0
    %104 = vmatprep.subr.bf16.mxu0 0
    %105 = vmatpush1.bf16.msra.mxu0 0
    %106 = vmatprep.subr.bf16.mxu0 0
    %107 = vmatpush1.bf16.msra.mxu0 0
    %108 = vmatprep.subr.bf16.mxu0 0
    %109 = vmatpush1.bf16.msra.mxu0 0
    %110 = vmatprep.subr.bf16.mxu0 0
    %111 = vmatpush1.bf16.msra.mxu0 0
    %112 = vmatprep.subr.bf16.mxu0 %v91
    %113 = vmatpush1.bf16.msra.mxu0 %v90
    %114 = vmatprep.subr.bf16.mxu0 0
    %115 = vmatpush2.bf16.msra.mxu0 0
    %116 = vmatprep.subr.bf16.mxu0 0
    %117 = vmatpush2.bf16.msra.mxu0 0
    %118 = vmatprep.subr.bf16.mxu0 0
    %119 = vmatpush2.bf16.msra.mxu0 0
    %120 = vmatprep.subr.bf16.mxu0 0
    %121 = vmatpush2.bf16.msra.mxu0 0
    %122 = vmatprep.subr.bf16.mxu0 0
    %123 = vmatpush2.bf16.msra.mxu0 0
    %124 = vmatprep.subr.bf16.mxu0 0
    %125 = vmatpush2.bf16.msra.mxu0 0
    %126 = vmatprep.subr.bf16.mxu0 0
    %127 = vmatpush2.bf16.msra.mxu0 0
    %128 = vmatprep.subr.bf16.mxu0 0
    %129 = vmatpush2.bf16.msra.mxu0 0
    %130 = vmatprep.mubr.bf16.mxu0 0
    %131 = vmatmul.mubr.bf16.gmra.mxu0 %v96
    %v132 = vpop.f32.mrf.mxu0
    %v133 = vadd.f32 %v77, %v132
    %v134 = vpop.f32.mrf.mxu0
    %v135 = vadd.f32 %v81, %v134
    %v136 = vpop.f32.mrf.mxu0
    %v137 = vpop.f32.mrf.mxu0
    %138 = vdwg.mxu0
    %v139 = vmax.f32 %v133, 0.0
    %v140 = vmax.f32 %v135, 0.0
    %v141 = vpack.c.bf16 %v139, %v139
    %v142 = vpack.c.bf16 %v140, %v140
    %v143 = vld [vmem:[#allocation6] sm:$0xff]
    %v144 = vld [vmem:[#allocation6 + $0x8] sm:$0xff]
    %v145 = vld [vmem:[#allocation6 + $0x10] sm:$0xff]
    %v146 = vld [vmem:[#allocation6 + $0x18] sm:$0xff]
    %v147 = vld [vmem:[#allocation6 + $0x20] sm:$0xff]
    %v148 = vld [vmem:[#allocation6 + $0x28] sm:$0xff]
    %v149 = vld [vmem:[#allocation6 + $0x30] sm:$0xff]
    %v150 = vld [vmem:[#allocation6 + $0x38] sm:$0xff]
    %v151 = vld [vmem:[#allocation6 + $0x40] sm:$0xff]
    %v152 = vld [vmem:[#allocation6 + $0x48] sm:$0xff]
    %v153 = vld [vmem:[#allocation6 + $0x50] sm:$0xff]
    %v154 = vld [vmem:[#allocation6 + $0x58] sm:$0xff]
    %v155 = vld [vmem:[#allocation6 + $0x60] sm:$0xff]
    %v156 = vld [vmem:[#allocation6 + $0x68] sm:$0xff]
    %v157 = vld [vmem:[#allocation6 + $0x70] sm:$0xff]
    %v158 = vld [vmem:[#allocation6 + $0x78] sm:$0xff]
    %v159 = vld [vmem:[#allocation6 + $0x80] sm:$0xff]
    %v160 = vld [vmem:[#allocation6 + $0x88] sm:$0xff]
    %v161 = vld [vmem:[#allocation6 + $0x90] sm:$0xff]
    %v162 = vld [vmem:[#allocation6 + $0x98] sm:$0xff]
    %v163 = vld [vmem:[#allocation6 + $0xa0] sm:$0xff]
    %v164 = vld [vmem:[#allocation6 + $0xa8] sm:$0xff]
    %v165 = vld [vmem:[#allocation6 + $0xb0] sm:$0xff]
    %v166 = vld [vmem:[#allocation6 + $0xb8] sm:$0xff]
    %v167 = vld [vmem:[#allocation6 + $0xc0] sm:$0xff]
    %v168 = vld [vmem:[#allocation6 + $0xc8] sm:$0xff]
    %v169 = vld [vmem:[#allocation6 + $0xd0] sm:$0xff]
    %v170 = vld [vmem:[#allocation6 + $0xd8] sm:$0xff]
    %v171 = vld [vmem:[#allocation6 + $0xe0] sm:$0xff]
    %v172 = vld [vmem:[#allocation6 + $0xe8] sm:$0xff]
    %v173 = vld [vmem:[#allocation6 + $0xf0] sm:$0xff]
    %v174 = vld [vmem:[#allocation6 + $0xf8] sm:$0xff]
    %v175 = vld [vmem:[%s1] sm:$0xff]
    %vm176 = vcmask 64512
    %v178 = vsel %vm176, %v175, 0
    %180 = vmatprep.subr.mxu0 0.0
    %181 = vmatpush1.msra.mxu0 0.0
    %182 = vmatprep.subr.mxu0 0.0
    %183 = vmatpush1.msra.mxu0 0.0
    %184 = vmatprep.subr.mxu0 0.0
    %185 = vmatpush1.msra.mxu0 0.0
    %186 = vmatprep.subr.mxu0 0.0
    %187 = vmatpush1.msra.mxu0 0.0
    %188 = vmatprep.subr.mxu0 0.0
    %189 = vmatpush1.msra.mxu0 0.0
    %190 = vmatprep.subr.mxu0 0.0
    %191 = vmatpush1.msra.mxu0 0.0
    %192 = vmatprep.subr.mxu0 0.0
    %193 = vmatpush1.msra.mxu0 0.0
    %194 = vmatprep.subr.mxu0 0.0
    %195 = vmatpush1.msra.mxu0 0.0
    %196 = vmatprep.subr.mxu0 0.0
    %197 = vmatpush1.msra.mxu0 0.0
    %198 = vmatprep.subr.mxu0 0.0
    %199 = vmatpush1.msra.mxu0 0.0
    %200 = vmatprep.subr.mxu0 0.0
    %201 = vmatpush1.msra.mxu0 0.0
    %202 = vmatprep.subr.mxu0 0.0
    %203 = vmatpush1.msra.mxu0 0.0
    %204 = vmatprep.subr.mxu0 0.0
    %205 = vmatpush1.msra.mxu0 0.0
    %206 = vmatprep.subr.mxu0 0.0
    %207 = vmatpush1.msra.mxu0 0.0
    %208 = vmatprep.subr.mxu0 0.0
    %209 = vmatpush1.msra.mxu0 0.0
    %210 = vmatprep.subr.mxu0 %v61
    %211 = vmatpush1.msra.mxu0 %v60
    %212 = vmatprep.subr.mxu0 0.0
    %213 = vmatpush2.msra.mxu0 0.0
    %214 = vmatprep.subr.mxu0 0.0
    %215 = vmatpush2.msra.mxu0 0.0
    %216 = vmatprep.subr.mxu0 0.0
    %217 = vmatpush2.msra.mxu0 0.0
    %218 = vmatprep.subr.mxu0 0.0
    %219 = vmatpush2.msra.mxu0 0.0
    %220 = vmatprep.subr.mxu0 0.0
    %221 = vmatpush2.msra.mxu0 0.0
    %222 = vmatprep.subr.mxu0 0.0
    %223 = vmatpush2.msra.mxu0 0.0
    %224 = vmatprep.subr.mxu0 0.0
    %225 = vmatpush2.msra.mxu0 0.0
    %226 = vmatprep.subr.mxu0 0.0
    %227 = vmatpush2.msra.mxu0 0.0
    %228 = vmatprep.subr.mxu0 0.0
    %229 = vmatpush2.msra.mxu0 0.0
    %230 = vmatprep.subr.mxu0 0.0
    %231 = vmatpush2.msra.mxu0 0.0
    %232 = vmatprep.subr.mxu0 0.0
    %233 = vmatpush2.msra.mxu0 0.0
    %234 = vmatprep.subr.mxu0 0.0
    %235 = vmatpush2.msra.mxu0 0.0
    %236 = vmatprep.subr.mxu0 0.0
    %237 = vmatpush2.msra.mxu0 0.0
    %238 = vmatprep.subr.mxu0 0.0
    %239 = vmatpush2.msra.mxu0 0.0
    %240 = vmatprep.subr.mxu0 0.0
    %241 = vmatpush2.msra.mxu0 0.0
    %242 = vmatprep.subr.mxu0 0.0
    %243 = vmatpush2.msra.mxu0 0.0
    %244 = vmatprep.mubr.f32.mxu0 0.0
    %245 = vmatmul.mubr.f32.gmra.mxu0 %v178
    %v246 = vpop.f32.mrf.mxu0
    %v247 = vadd.f32 0.0, %v246
    %v248 = vpop.f32.mrf.mxu0
    %v249 = vadd.f32 0.0, %v248
    %250 = vdwg.mxu0
    %v283 = vunpack.c.l.b16 %v143
    %v284 = vunpack.c.h.b16 %v143
    %v285 = vunpack.c.l.b16 %v144
    %v286 = vunpack.c.h.b16 %v144
    %v287 = vunpack.c.l.b16 %v145
    %v288 = vunpack.c.h.b16 %v145
    %v289 = vunpack.c.l.b16 %v146
    %v290 = vunpack.c.h.b16 %v146
    %v291 = vunpack.c.l.b16 %v147
    %v292 = vunpack.c.h.b16 %v147
    %v293 = vunpack.c.l.b16 %v148
    %v294 = vunpack.c.h.b16 %v148
    %v295 = vunpack.c.l.b16 %v149
    %v296 = vunpack.c.h.b16 %v149
    %v297 = vunpack.c.l.b16 %v150
    %v298 = vunpack.c.h.b16 %v150
    %v299 = vunpack.c.l.b16 %v151
    %v300 = vunpack.c.h.b16 %v151
    %v301 = vunpack.c.l.b16 %v152
    %v302 = vunpack.c.h.b16 %v152
    %v303 = vunpack.c.l.b16 %v153
    %v304 = vunpack.c.h.b16 %v153
    %v305 = vunpack.c.l.b16 %v154
    %v306 = vunpack.c.h.b16 %v154
    %v307 = vunpack.c.l.b16 %v155
    %v308 = vunpack.c.h.b16 %v155
    %v309 = vunpack.c.l.b16 %v156
    %v310 = vunpack.c.h.b16 %v156
    %v311 = vunpack.c.l.b16 %v157
    %v312 = vunpack.c.h.b16 %v157
    %v313 = vunpack.c.l.b16 %v158
    %v314 = vunpack.c.h.b16 %v158
    %v315 = vunpack.c.l.b16 %v159
    %v316 = vunpack.c.h.b16 %v159
    %v317 = vunpack.c.l.b16 %v160
    %v318 = vunpack.c.h.b16 %v160
    %v319 = vunpack.c.l.b16 %v161
    %v320 = vunpack.c.h.b16 %v161
    %v321 = vunpack.c.l.b16 %v162
    %v322 = vunpack.c.h.b16 %v162
    %v323 = vunpack.c.l.b16 %v163
    %v324 = vunpack.c.h.b16 %v163
    %v325 = vunpack.c.l.b16 %v164
    %v326 = vunpack.c.h.b16 %v164
    %v327 = vunpack.c.l.b16 %v165
    %v328 = vunpack.c.h.b16 %v165
    %v329 = vunpack.c.l.b16 %v166
    %v330 = vunpack.c.h.b16 %v166
    %v331 = vunpack.c.l.b16 %v167
    %v332 = vunpack.c.h.b16 %v167
    %v333 = vunpack.c.l.b16 %v168
    %v334 = vunpack.c.h.b16 %v168
    %v335 = vunpack.c.l.b16 %v169
    %v336 = vunpack.c.h.b16 %v169
    %v337 = vunpack.c.l.b16 %v170
    %v338 = vunpack.c.h.b16 %v170
    %v339 = vunpack.c.l.b16 %v171
    %v340 = vunpack.c.h.b16 %v171
    %v341 = vunpack.c.l.b16 %v172
    %v342 = vunpack.c.h.b16 %v172
    %v343 = vunpack.c.l.b16 %v173
    %v344 = vunpack.c.h.b16 %v173
    %v345 = vunpack.c.l.b16 %v174
    %v346 = vunpack.c.h.b16 %v174
    %v347 = vpack.c.b16 %v285, %v283
    %v348 = vpack.c.b16 %v286, %v284
    %v349 = vpack.c.b16 %v289, %v287
    %v350 = vpack.c.b16 %v290, %v288
    %v351 = vpack.c.b16 %v293, %v291
    %v352 = vpack.c.b16 %v294, %v292
    %v353 = vpack.c.b16 %v297, %v295
    %v354 = vpack.c.b16 %v298, %v296
    %v355 = vpack.c.b16 %v301, %v299
    %v356 = vpack.c.b16 %v302, %v300
    %v357 = vpack.c.b16 %v305, %v303
    %v358 = vpack.c.b16 %v306, %v304
    %v359 = vpack.c.b16 %v309, %v307
    %v360 = vpack.c.b16 %v310, %v308
    %v361 = vpack.c.b16 %v313, %v311
    %v362 = vpack.c.b16 %v314, %v312
    %v363 = vpack.c.b16 %v317, %v315
    %v364 = vpack.c.b16 %v318, %v316
    %v365 = vpack.c.b16 %v321, %v319
    %v366 = vpack.c.b16 %v322, %v320
    %v367 = vpack.c.b16 %v325, %v323
    %v368 = vpack.c.b16 %v326, %v324
    %v369 = vpack.c.b16 %v329, %v327
    %v370 = vpack.c.b16 %v330, %v328
    %v371 = vpack.c.b16 %v333, %v331
    %v372 = vpack.c.b16 %v334, %v332
    %v373 = vpack.c.b16 %v337, %v335
    %v374 = vpack.c.b16 %v338, %v336
    %v375 = vpack.c.b16 %v341, %v339
    %v376 = vpack.c.b16 %v342, %v340
    %v377 = vpack.c.b16 %v345, %v343
    %v378 = vpack.c.b16 %v346, %v344
    %411 = vmatprep.subr.bf16.mxu0 %v362
    %412 = vmatpush1.bf16.msra.mxu0 %v361
    %413 = vmatprep.subr.bf16.mxu0 %v360
    %414 = vmatpush1.bf16.msra.mxu0 %v359
    %415 = vmatprep.subr.bf16.mxu0 %v358
    %416 = vmatpush1.bf16.msra.mxu0 %v357
    %417 = vmatprep.subr.bf16.mxu0 %v356
    %418 = vmatpush1.bf16.msra.mxu0 %v355
    %419 = vmatprep.subr.bf16.mxu0 %v354
    %420 = vmatpush1.bf16.msra.mxu0 %v353
    %421 = vmatprep.subr.bf16.mxu0 %v352
    %422 = vmatpush1.bf16.msra.mxu0 %v351
    %423 = vmatprep.subr.bf16.mxu0 %v350
    %424 = vmatpush1.bf16.msra.mxu0 %v349
    %425 = vmatprep.subr.bf16.mxu0 %v348
    %426 = vmatpush1.bf16.msra.mxu0 %v347
    %427 = vmatprep.subr.bf16.mxu0 %v378
    %428 = vmatpush2.bf16.msra.mxu0 %v377
    %429 = vmatprep.subr.bf16.mxu0 %v376
    %430 = vmatpush2.bf16.msra.mxu0 %v375
    %431 = vmatprep.subr.bf16.mxu0 %v374
    %432 = vmatpush2.bf16.msra.mxu0 %v373
    %433 = vmatprep.subr.bf16.mxu0 %v372
    %434 = vmatpush2.bf16.msra.mxu0 %v371
    %435 = vmatprep.subr.bf16.mxu0 %v370
    %436 = vmatpush2.bf16.msra.mxu0 %v369
    %437 = vmatprep.subr.bf16.mxu0 %v368
    %438 = vmatpush2.bf16.msra.mxu0 %v367
    %439 = vmatprep.subr.bf16.mxu0 %v366
    %440 = vmatpush2.bf16.msra.mxu0 %v365
    %441 = vmatprep.subr.bf16.mxu0 %v364
    %442 = vmatpush2.bf16.msra.mxu0 %v363
    %443 = vmatprep.mubr.bf16.mxu0 %v142
    %444 = vmatmul.mubr.bf16.gmra.mxu0 %v141
    %v445 = vpop.f32.mrf.mxu0
    %v446 = vadd.f32 %v247, %v445
    %v447 = vpop.f32.mrf.mxu0
    %v448 = vadd.f32 %v249, %v447
    %v449 = vpop.f32.mrf.mxu0
    %v450 = vpop.f32.mrf.mxu0
    %451 = vdwg.mxu0
    %v453 = vlaneseq
    %v454 = vshrl.u32 %v453, 7
    %v455 = vsub.s32 0, %v454
    %v456 = vrot.slane %v65, %v455
    %v457 = vlaneseq
    %v458 = vshrl.u32 %v457, 7
    %v459 = vsub.s32 1, %v458
    %v460 = vrot.slane %v65, %v459
    %v463 = vadd.f32 %v446, %v456
    %v464 = vadd.f32 %v448, %v460
    %v465 = vmax.f32 %v463, 0.0
    %v466 = vmax.f32 %v464, 0.0
    %v468 = vlaneseq
    %v469 = vshrl.u32 %v468, 7
    %v470 = vsub.s32 0, %v469
    %v471 = vrot.slane %v67, %v470
    %v472 = vlaneseq
    %v473 = vshrl.u32 %v472, 7
    %v474 = vsub.s32 1, %v473
    %v475 = vrot.slane %v67, %v474
    %v478 = vmul.f32 %v465, %v471
    %v479 = vmul.f32 %v466, %v475
    %v480 = vadd.f32 %v478, %v479
    %481 = vadd.xlane.f32.xlu0 %v480
    %v482 = vpop.xlane.xlu0 %481
    %v483 = vadd.f32 %v482, %v68
    %vm484 = vcmask 7168
    %485 = vst.msk [vmem:[%s5] sm:$0xff] %vm484, %v483
    // Predicated region
    $region34: #{critic_forward.1} parent=1 // pred_check
      _
    $region35: #{critic_forward.1} parent=1 // pred_check_branch
      %487 = sbr.rel (0) target = $region37
    $region36: #{critic_forward.1} parent=1 // pred_region
      _
    $region37: #{critic_forward.1} parent=1 // pred_fallthru
      _
    // Predicated region
    $region38: #{critic_forward.1} parent=1 // pred_check
      _
    $region39: #{critic_forward.1} parent=1 // pred_check_branch
      %489 = sbr.rel (0) target = $region41
    $region40: #{critic_forward.1} parent=1 // pred_region
      _
    $region41: #{critic_forward.1} parent=1 // pred_fallthru
      _
    %490 = vsyncpa [#allocation3], 1
    %491 = vsyncpa [#allocation5], 1

</llo_original>
